<compile_context>
chip_gen: v7x
topology: tpu7x:2x2x1
jax: 0.10.0
libtpu: 0.0.40
codegen_flags: <defaults>
</compile_context>

<pallas_src>
import jax
import jax.numpy as jnp
from jax.experimental import pallas as pl
from jax.experimental.pallas import tpu as pltpu

_TILE_M = 128          # A row tile (output rows)
_TILE_K = 128          # A column tile (reduction axis)
_LANE = 128
_SUBLANE = 8
_VMEM_LIMIT = 32 * 1024 * 1024


# ----------------------------- Pallas kernels -----------------------------

def _conv1_kernel(a_ref, xw1_ref, b1_ref, w2a_ref, rc_ref, z_ref, acc_ref):
    """Per branch: h = A @ XW1 + b1 ; z = relu(h) @ W2a + root_contrib."""
    k = pl.program_id(2)

    @pl.when(k == 0)
    def _():
        acc_ref[...] = jnp.zeros_like(acc_ref)

    acc_ref[...] += jnp.dot(a_ref[0], xw1_ref[0],
                            preferred_element_type=jnp.float32)

    @pl.when(k == pl.num_programs(2) - 1)
    def _():
        # bias + relu only once, in the reduction epilogue
        h = jnp.maximum(acc_ref[...] + b1_ref[0], 0.0)               # (TM, hid)
        z = jnp.dot(h.astype(jnp.bfloat16), w2a_ref[0],
                    preferred_element_type=jnp.float32)
        z = z + rc_ref[0].astype(jnp.float32)
        # TODO(synk): F.dropout(training=True) omitted — eval mode (identity).
        z_ref[0] = z.astype(z_ref.dtype)


def _conv2_pool_kernel(a_ref, z_ref, b2_ref, p_ref, o_ref, acc_ref, pool_ref):
    """Per branch: h2 = relu(A @ z + b2) ; pooled = P @ h2 (graph mean-pool)."""
    i = pl.program_id(1)
    k = pl.program_id(2)

    @pl.when(k == 0)
    def _():
        acc_ref[...] = jnp.zeros_like(acc_ref)

    @pl.when(jnp.logical_and(i == 0, k == 0))
    def _():
        pool_ref[...] = jnp.zeros_like(pool_ref)

    acc_ref[...] += jnp.dot(a_ref[0], z_ref[0],
                            preferred_element_type=jnp.float32)

    @pl.when(k == pl.num_programs(2) - 1)
    def _():
        h2 = jnp.maximum(acc_ref[...] + b2_ref[0], 0.0)              # (TM, out)
        pool_ref[...] += jnp.dot(p_ref[...], h2.astype(jnp.bfloat16),
                                 preferred_element_type=jnp.float32)

    @pl.when(jnp.logical_and(i == pl.num_programs(1) - 1,
                             k == pl.num_programs(2) - 1))
    def _():
        o_ref[0] = pool_ref[...]


# ------------------------------ glue helpers ------------------------------

def _round_up(x, m):
    return (x + m - 1) // m * m


def _pad_to(arr, shape, dtype=None):
    pads = [(0, t - s) for s, t in zip(arr.shape, shape)]
    out = jnp.pad(arr, pads)
    return out.astype(dtype) if dtype is not None else out


def _normalized_adjacency(edge_index, num_nodes):
    """Dense GCNConv propagation matrix: self-loops + D^-1/2 (A+I) D^-1/2."""
    src, dst = edge_index[0], edge_index[1]
    loops = jnp.arange(num_nodes, dtype=src.dtype)
    src = jnp.concatenate([src, loops])
    dst = jnp.concatenate([dst, loops])
    deg = jnp.zeros((num_nodes,), jnp.float32).at[dst].add(1.0)
    dinv = jnp.where(deg > 0, 1.0 / jnp.sqrt(deg), 0.0)
    norm = dinv[src] * dinv[dst]
    a_hat = jnp.zeros((num_nodes, num_nodes), jnp.float32)
    return a_hat.at[dst, src].add(norm)          # messages flow src -> dst


# ------------------------------ forward pass -------------------------------

def net_forward(params, x, edge_index, bu_edge_index, batch, root_index):
    n, _ = x.shape
    bsz = int(root_index.shape[0])
    hid, out = params["hid"], params["out"]

    n_pad = _round_up(n, max(_TILE_M, _TILE_K))
    hid_pad = _round_up(hid, _LANE)
    out_pad = _round_up(out, _LANE)
    b_pad = _round_up(bsz, _SUBLANE)

    f32, bf16 = jnp.float32, jnp.bfloat16

    # TODO(synk): A_hat is block-diagonal across graphs; a per-graph tiling of
    # A would cut FLOPs/HBM by G x at large batch sizes (kept dense here).
    a = jnp.stack([_normalized_adjacency(edge_index, n),
                   _normalized_adjacency(bu_edge_index, n)])          # (2, N, N)
    a_p = _pad_to(a, (2, n_pad, n_pad), bf16)

    # stacked per-branch parameters (TD = 0, BU = 1)
    w1 = jnp.stack([params["td"]["w1"], params["bu"]["w1"]])          # (2, F, hid)
    b1 = jnp.stack([params["td"]["b1"], params["bu"]["b1"]])          # (2, hid)
    w2 = jnp.stack([params["td"]["w2"], params["bu"]["w2"]])          # (2, hid+F, out)
    b2 = jnp.stack([params["td"]["b2"], params["bu"]["b2"]])          # (2, out)
    w2a, w2b = w2[:, :hid], w2[:, hid:]

    xf = x.astype(f32)
    # conv1 affine part X @ W1 (tiny vs. the A matmuls; stays in XLA)
    xw1 = jnp.einsum("nf,bfh->bnh", xf, w1)                           # (2, N, hid)
    xw1_p = _pad_to(xw1, (2, n_pad, hid_pad), bf16)

    # root_extend #1: relu(x1[root]) @ W2b, broadcast per node via batch gather
    roots_x = jnp.maximum(xf[root_index], 0.0)                        # (B, F)
    rc = jnp.einsum("gf,bfo->bgo", roots_x, w2b)[:, batch, :]         # (2, N, out)
    rc_p = _pad_to(rc, (2, n_pad, out_pad), bf16)

    b1_p = _pad_to(b1[:, None, :], (2, 1, hid_pad), f32)
    b2_p = _pad_to(b2[:, None, :], (2, 1, out_pad), f32)
    w2a_p = _pad_to(w2a, (2, hid_pad, out_pad), bf16)

    # graph mean-pool matrix P[b, i] = 1/|graph b| if batch[i] == b
    onehot = jax.nn.one_hot(batch, bsz, dtype=f32)                    # (N, B)
    pool = (onehot / jnp.maximum(onehot.sum(axis=0), 1.0)).T          # (B, N)
    pool_p = _pad_to(pool, (b_pad, n_pad), bf16)

    grid = (2, n_pad // _TILE_M, n_pad // _TILE_K)

    # ---- pass 1 (fused TD+BU): z = relu(conv1) @ W2a + root contribution ----
    z = pl.pallas_call(
        _conv1_kernel,
        out_shape=jax.ShapeDtypeStruct((2, n_pad, out_pad), bf16),
        grid_spec=pltpu.PrefetchScalarGridSpec(
            num_scalar_prefetch=0, grid=grid,
            in_specs=[
                pl.BlockSpec((1, _TILE_M, _TILE_K), lambda b, i, k: (b, i, k)),
                pl.BlockSpec((1, _TILE_K, hid_pad), lambda b, i, k: (b, k, 0)),
                pl.BlockSpec((1, 1, hid_pad), lambda b, i, k: (b, 0, 0)),
                pl.BlockSpec((1, hid_pad, out_pad), lambda b, i, k: (b, 0, 0)),
                pl.BlockSpec((1, _TILE_M, out_pad), lambda b, i, k: (b, i, 0)),
            ],
            out_specs=pl.BlockSpec((1, _TILE_M, out_pad),
                                   lambda b, i, k: (b, i, 0)),
            scratch_shapes=[pltpu.VMEM((_TILE_M, hid_pad), f32)]),
        compiler_params=pltpu.CompilerParams(
            dimension_semantics=("parallel", "parallel", "arbitrary"),
            vmem_limit_bytes=_VMEM_LIMIT),
    )(a_p, xw1_p, b1_p, w2a_p, rc_p)

    # ---- pass 2 (fused TD+BU): pooled = P @ relu(conv2) ----
    pooled = pl.pallas_call(
        _conv2_pool_kernel,
        out_shape=jax.ShapeDtypeStruct((2, b_pad, out_pad), f32),
        grid_spec=pltpu.PrefetchScalarGridSpec(
            num_scalar_prefetch=0, grid=grid,
            in_specs=[
                pl.BlockSpec((1, _TILE_M, _TILE_K), lambda b, i, k: (b, i, k)),
                pl.BlockSpec((1, _TILE_K, out_pad), lambda b, i, k: (b, k, 0)),
                pl.BlockSpec((1, 1, out_pad), lambda b, i, k: (b, 0, 0)),
                pl.BlockSpec((b_pad, _TILE_M), lambda b, i, k: (0, i)),
            ],
            out_specs=pl.BlockSpec((1, b_pad, out_pad),
                                   lambda b, i, k: (b, 0, 0)),
            scratch_shapes=[pltpu.VMEM((_TILE_M, out_pad), f32),
                            pltpu.VMEM((b_pad, out_pad), f32)]),
        compiler_params=pltpu.CompilerParams(
            dimension_semantics=("parallel", "arbitrary", "arbitrary"),
            vmem_limit_bytes=_VMEM_LIMIT),
    )(a_p, z, b2_p, pool_p)

    # root_extend #2: scatter_mean of (conv1 output at roots, broadcast per
    # graph) collapses to the conv1 output rows at root_index (P @ Q == I).
    roots_h = jnp.einsum("bgn,bnh->bgh", a_p[:, root_index, :], xw1_p,
                         preferred_element_type=f32) + b1_p           # (2, B, hid_pad)

    td_x = jnp.concatenate([pooled[0, :bsz, :out], roots_h[0, :, :hid]], axis=1)
    bu_x = jnp.concatenate([pooled[1, :bsz, :out], roots_h[1, :, :hid]], axis=1)
    xcat = jnp.concatenate([td_x, bu_x], axis=1)          # (B, 2*(out+hid))

    # final FC + log_softmax: ~B*132*2 FLOPs — plain XLA (Pallas overhead dominates)
    logits = xcat @ params["fc_w"] + params["fc_b"]
    m = jnp.max(logits, axis=-1, keepdims=True)
    lse = m + jnp.log(jnp.sum(jnp.exp(logits - m), axis=-1, keepdims=True))
    # TODO(synk): torch stashes numpy embeddings / pred_probs on the class
    # (host-side side effect); not part of the device computation.
    return logits - lse


# ---------------------------------- main -----------------------------------

def _init_params(key, in_feats, hid_feats, out_feats):
    ks = jax.random.split(key, 6)
    s = 0.1
    def branch(k1, k2):
        return {
            "w1": jax.random.normal(k1, (in_feats, hid_feats), jnp.float32) * s,
            "b1": jnp.zeros((hid_feats,), jnp.float32),
            "w2": jax.random.normal(k2, (hid_feats + in_feats, out_feats),
                                    jnp.float32) * s,
            "b2": jnp.zeros((out_feats,), jnp.float32),
        }
    return {
        "hid": hid_feats,
        "out": out_feats,
        "td": branch(ks[0], ks[1]),
        "bu": branch(ks[2], ks[3]),
        "fc_w": jax.random.normal(ks[4], ((out_feats + hid_feats) * 2, 2),
                                  jnp.float32) * s,
        "fc_b": jnp.zeros((2,), jnp.float32),
    }


if __name__ == "__main__":
    in_feats, hid_feats, out_feats = 16, 32, 32
    num_nodes, num_graphs = 16, 2

    key = jax.random.PRNGKey(0)
    kx, kp = jax.random.split(key)

    # Node features: 16 nodes, 2 graphs of 8 nodes each.
    x = jax.random.normal(kx, (num_nodes, in_feats), jnp.float32)
    batch = jnp.array([0] * 8 + [1] * 8, jnp.int32)
    root_index = jnp.array([0, 8], jnp.int32)
    assert int(jnp.max(root_index)) < num_nodes  # roots must be valid node ids

    # Top-down tree edges (parent -> child) per graph; BU is the reverse.
    tree = [(0, 1), (0, 2), (1, 3), (1, 4), (2, 5), (2, 6), (3, 7)]
    src = [s for s, _ in tree] + [s + 8 for s, _ in tree]
    dst = [d for _, d in tree] + [d + 8 for _, d in tree]
    edge_index = jnp.array([src, dst], jnp.int32)         # TD  (2, 14)
    bu_edge_index = jnp.array([dst, src], jnp.int32)      # BU  (2, 14)

    params = _init_params(kp, in_feats, hid_feats, out_feats)

    out = net_forward(params, x, edge_index, bu_edge_index, batch, root_index)
    out = jax.block_until_ready(out)
    assert out.shape == (num_graphs, 2)
    assert bool(jnp.all(jnp.isfinite(out)))
    print("KERNEL_OK")
</pallas_src>

<mosaic_0001>
module attributes {stable_mosaic.version = 11 : i64} {
  func.func @_conv1_kernel(%arg0: i32, %arg1: i32, %arg2: i32, %arg3: memref<1x128x128xbf16, #tpu.memory_space<vmem>>, %arg4: memref<1x128x128xbf16, #tpu.memory_space<vmem>>, %arg5: memref<1x1x128xf32, #tpu.memory_space<vmem>>, %arg6: memref<1x128x128xbf16, #tpu.memory_space<vmem>>, %arg7: memref<1x128x128xbf16, #tpu.memory_space<vmem>>, %arg8: memref<1x128x128xbf16, #tpu.memory_space<vmem>>, %arg9: memref<128x128xf32, #tpu.memory_space<vmem>>) attributes {dimension_semantics = [#tpu.dimension_semantics<parallel>, #tpu.dimension_semantics<parallel>, #tpu.dimension_semantics<arbitrary>], iteration_bounds = array<i64: 2, 1, 1>, scalar_prefetch = 0 : i64, scratch_operands = 1 : i64, tpu.core_type = #tpu.core_type<tc>, window_params = [{transform_indices = @transform_0, window_bounds = array<i64: 1, 128, 128>}, {transform_indices = @transform_1, window_bounds = array<i64: 1, 128, 128>}, {transform_indices = @transform_2, window_bounds = array<i64: 1, 1, 128>}, {transform_indices = @transform_3, window_bounds = array<i64: 1, 128, 128>}, {transform_indices = @transform_4, window_bounds = array<i64: 1, 128, 128>}, {transform_indices = @transform_5, window_bounds = array<i64: 1, 128, 128>}]} {
    %c0_i32 = arith.constant 0 : i32
    %0 = arith.cmpi eq, %arg2, %c0_i32 : i32
    %1 = arith.extui %0 : i1 to i32
    %c0_i32_0 = arith.constant 0 : i32
    %2 = arith.cmpi ne, %1, %c0_i32_0 : i32
    scf.if %2 {
      %cst_12 = arith.constant 0.000000e+00 : f32
      %14 = vector.broadcast %cst_12 : f32 to vector<128x128xf32>
      %c0_13 = arith.constant 0 : index
      %c0_14 = arith.constant 0 : index
      %15 = vector.load %arg9[%c0_13, %c0_14] : memref<128x128xf32, #tpu.memory_space<vmem>>, vector<128x128xf32>
      tpu.vector_store %arg9[%c0_13, %c0_14], %14 {strides = array<i32>} : memref<128x128xf32, #tpu.memory_space<vmem>>, vector<128x128xf32>,
    } else {
    }
    %c0 = arith.constant 0 : index
    %c0_1 = arith.constant 0 : index
    %3 = vector.load %arg9[%c0, %c0_1] : memref<128x128xf32, #tpu.memory_space<vmem>>, vector<128x128xf32>
    %c0_2 = arith.constant 0 : index
    %c0_3 = arith.constant 0 : index
    %c0_4 = arith.constant 0 : index
    %4 = vector.load %arg3[%c0_2, %c0_3, %c0_4] : memref<1x128x128xbf16, #tpu.memory_space<vmem>>, vector<1x128x128xbf16>
    %5 = vector.shape_cast %4 : vector<1x128x128xbf16> to vector<128x128xbf16>
    %c0_5 = arith.constant 0 : index
    %c0_6 = arith.constant 0 : index
    %c0_7 = arith.constant 0 : index
    %6 = vector.load %arg4[%c0_5, %c0_6, %c0_7] : memref<1x128x128xbf16, #tpu.memory_space<vmem>>, vector<1x128x128xbf16>
    %7 = vector.shape_cast %6 : vector<1x128x128xbf16> to vector<128x128xbf16>
    %cst = arith.constant dense<0.000000e+00> : vector<128x128xf32>
    %8 = tpu.matmul %5, %7, %cst {dimension_numbers = #tpu.dot_dimension_numbers<[1], [0], [0], [1], [0, 0, 1, 1], [], []>} : vector<128x128xbf16>, vector<128x128xbf16>, vector<128x128xf32> -> vector<128x128xf32>
    %9 = arith.addf %3, %8 : vector<128x128xf32>
    %c0_8 = arith.constant 0 : index
    %c0_9 = arith.constant 0 : index
    %10 = vector.load %arg9[%c0_8, %c0_9] : memref<128x128xf32, #tpu.memory_space<vmem>>, vector<128x128xf32>
    tpu.vector_store %arg9[%c0_8, %c0_9], %9 {strides = array<i32>} : memref<128x128xf32, #tpu.memory_space<vmem>>, vector<128x128xf32>,
    %c0_i32_10 = arith.constant 0 : i32
    %11 = arith.cmpi eq, %arg2, %c0_i32_10 : i32
    %12 = arith.extui %11 : i1 to i32
    %c0_i32_11 = arith.constant 0 : i32
    %13 = arith.cmpi ne, %12, %c0_i32_11 : i32
    scf.if %13 {
      %c0_12 = arith.constant 0 : index
      %c0_13 = arith.constant 0 : index
      %14 = vector.load %arg9[%c0_12, %c0_13] : memref<128x128xf32, #tpu.memory_space<vmem>>, vector<128x128xf32>
      %c0_14 = arith.constant 0 : index
      %c0_15 = arith.constant 0 : index
      %c0_16 = arith.constant 0 : index
      %15 = vector.load %arg5[%c0_14, %c0_15, %c0_16] : memref<1x1x128xf32, #tpu.memory_space<vmem>>, vector<1x1x128xf32>
      %16 = vector.shape_cast %15 : vector<1x1x128xf32> to vector<1x128xf32>
      %17 = vector.broadcast %16 : vector<1x128xf32> to vector<128x128xf32>
      %18 = arith.addf %14, %17 : vector<128x128xf32>
      %cst_17 = arith.constant 0.000000e+00 : f32
      %19 = vector.broadcast %cst_17 : f32 to vector<128x128xf32>
      %20 = arith.maximumf %18, %19 : vector<128x128xf32>
      %21 = arith.truncf %20 : vector<128x128xf32> to vector<128x128xbf16>
      %c0_18 = arith.constant 0 : index
      %c0_19 = arith.constant 0 : index
      %c0_20 = arith.constant 0 : index
      %22 = vector.load %arg6[%c0_18, %c0_19, %c0_20] : memref<1x128x128xbf16, #tpu.memory_space<vmem>>, vector<1x128x128xbf16>
      %23 = vector.shape_cast %22 : vector<1x128x128xbf16> to vector<128x128xbf16>
      %cst_21 = arith.constant dense<0.000000e+00> : vector<128x128xf32>
      %24 = tpu.matmul %21, %23, %cst_21 {dimension_numbers = #tpu.dot_dimension_numbers<[1], [0], [0], [1], [0, 0, 1, 1], [], []>} : vector<128x128xbf16>, vector<128x128xbf16>, vector<128x128xf32> -> vector<128x128xf32>
      %c0_22 = arith.constant 0 : index
      %c0_23 = arith.constant 0 : index
      %c0_24 = arith.constant 0 : index
      %25 = vector.load %arg7[%c0_22, %c0_23, %c0_24] : memref<1x128x128xbf16, #tpu.memory_space<vmem>>, vector<1x128x128xbf16>
      %26 = vector.shape_cast %25 : vector<1x128x128xbf16> to vector<128x128xbf16>
      %27 = arith.extf %26 : vector<128x128xbf16> to vector<128x128xf32>
      %28 = arith.addf %24, %27 : vector<128x128xf32>
      %29 = arith.truncf %28 : vector<128x128xf32> to vector<128x128xbf16>
      %c0_25 = arith.constant 0 : index
      %c0_26 = arith.constant 0 : index
      %c0_27 = arith.constant 0 : index
      %30 = vector.load %arg8[%c0_25, %c0_26, %c0_27] : memref<1x128x128xbf16, #tpu.memory_space<vmem>>, vector<1x128x128xbf16>
      %31 = vector.shape_cast %30 : vector<1x128x128xbf16> to vector<128x128xbf16>
      %32 = vector.shape_cast %29 : vector<128x128xbf16> to vector<1x128x128xbf16>
      tpu.vector_store %arg8[%c0_25, %c0_26, %c0_27], %32 {strides = array<i32>} : memref<1x128x128xbf16, #tpu.memory_space<vmem>>, vector<1x128x128xbf16>,
    } else {
    }
    return
  }
  func.func @transform_0(%arg0: i32, %arg1: i32, %arg2: i32) -> (i32, i32, i32) {
    %c0_i32 = arith.constant 0 : i32
    return %arg0, %arg1, %arg2 : i32, i32, i32
  }
  func.func @transform_1(%arg0: i32, %arg1: i32, %arg2: i32) -> (i32, i32, i32) {
    %c0_i32 = arith.constant 0 : i32
    %c0_i32_0 = arith.constant 0 : i32
    return %arg0, %arg2, %c0_i32 : i32, i32, i32
  }
  func.func @transform_2(%arg0: i32, %arg1: i32, %arg2: i32) -> (i32, i32, i32) {
    %c0_i32 = arith.constant 0 : i32
    %c0_i32_0 = arith.constant 0 : i32
    %c0_i32_1 = arith.constant 0 : i32
    return %arg0, %c0_i32, %c0_i32_0 : i32, i32, i32
  }
  func.func @transform_3(%arg0: i32, %arg1: i32, %arg2: i32) -> (i32, i32, i32) {
    %c0_i32 = arith.constant 0 : i32
    %c0_i32_0 = arith.constant 0 : i32
    %c0_i32_1 = arith.constant 0 : i32
    return %arg0, %c0_i32, %c0_i32_0 : i32, i32, i32
  }
  func.func @transform_4(%arg0: i32, %arg1: i32, %arg2: i32) -> (i32, i32, i32) {
    %c0_i32 = arith.constant 0 : i32
    %c0_i32_0 = arith.constant 0 : i32
    return %arg0, %arg1, %c0_i32 : i32, i32, i32
  }
  func.func @transform_5(%arg0: i32, %arg1: i32, %arg2: i32) -> (i32, i32, i32) {
    %c0_i32 = arith.constant 0 : i32
    %c0_i32_0 = arith.constant 0 : i32
    return %arg0, %arg1, %c0_i32 : i32, i32, i32
  }
}

</mosaic_0001>

<llo_original>
// kernel: tpu_custom_call.1
$region0: #{tpu_custom_call.1}
  #allocation0 [shape = 'u32[]', space=smem, size = 0x4, offset = 0x4, fixed_abs, tag = 'smem constant byte address 0x4 - core index']
  #allocation1 [shape = 'u32[144,128]{1,0:T(1,128)}', space=vmem, size = 0x12000, scoped, tag = 'internal scratch']
  #allocation2 [shape = 'f32[128,128]{1,0:T(8,128)}', space=vmem, size = 0x10000, scoped, tag = 'scratch operand']
  %s0 = inlined_call_operand.hbm [shape: bf16[2,128,128], index: 0, kind: input, shape index: {}]
  %s1 = inlined_call_operand.hbm [shape: bf16[2,128,128], index: 1, kind: input, shape index: {}]
  %s2 = inlined_call_operand.vmem [shape: f32[2,1,128], index: 2, kind: input, shape index: {}]
  %s3 = inlined_call_operand.hbm [shape: bf16[2,128,128], index: 3, kind: input, shape index: {}]
  %s4 = inlined_call_operand.hbm [shape: bf16[2,128,128], index: 4, kind: input, shape index: {}]
  %s5 = inlined_call_operand.hbm [shape: bf16[2,128,128], index: 5, kind: output, shape index: {}]
  %s6 = sld [smem:[#allocation0]]
  $region77: #{tpu_custom_call.1} parent=0
    _
  %s8 = ssub.s32 1, %s6
  %s9 = scalar_select 0, %s8, %s6
  $region1: #{tpu_custom_call.1} parent=0
    #allocation3 [shape = 'u8[65536]{0}', space=vmem, size = 0x10000, scoped, tag = 'input window, operand 0']
    #allocation4 [shape = 's32[2]{0}', space=sflag, size = 0x8, scoped, tag = 'scoped memory for tpu_custom_call.1']
    #allocation5 [shape = 's32[2]{0}', space=sflag, size = 0x8, scoped, tag = 'scoped memory for tpu_custom_call.1']
    #allocation6 [shape = 'u8[65536]{0}', space=vmem, size = 0x10000, scoped, tag = 'input window, operand 1']
    #allocation7 [shape = 's32[2]{0}', space=sflag, size = 0x8, scoped, tag = 'scoped memory for tpu_custom_call.1']
    #allocation8 [shape = 'u8[65536]{0}', space=vmem, size = 0x10000, scoped, tag = 'input window, operand 3']
    #allocation9 [shape = 'u8[65536]{0}', space=vmem, size = 0x10000, scoped, tag = 'input window, operand 4']
    #allocation10 [shape = 's32[2]{0}', space=sflag, size = 0x8, scoped, tag = 'scoped memory for tpu_custom_call.1']
    #allocation11 [shape = 'u8[65536]{0}', space=vmem, size = 0x10000, scoped, tag = 'output window, operand 0']
    %10 = vsyncpa [#allocation4], 0
    %s11 = scalar_lea.sflag [#allocation4], 1
    %12 = vsyncpa %s11, 0
    %13 = vsyncpa [#allocation7], 0
    %s14 = scalar_lea.sflag [#allocation7], 1
    %15 = vsyncpa %s14, 0
    %16 = vsyncpa [#allocation10], 0
    %s17 = scalar_lea.sflag [#allocation10], 1
    %18 = vsyncpa %s17, 0
    %19 = vsyncpa [#allocation5], 0
    %s20 = scalar_lea.sflag [#allocation5], 1
    %21 = vsyncpa %s20, 0
    loop: start=0, step=1, limit=4
    $region2: #{tpu_custom_call.1} parent=1 // loop_pre_header
      _
    $region3: #{tpu_custom_call.1} parent=1 // loop_header
      %s23 = sphi 0, %s27
      %p24 = scmp.ge.s32.totalorder %s23, 4
      %s30 = sphi 0, %s49
      %s31 = sphi 0, %s45
      %s32 = sphi 0, %s41
      %s33 = sphi 0, %s30
      %s34 = sphi 0, %s31
      %s35 = sphi 0, %s32
      %s36 = sphi 0, %s33
      %s37 = sphi 0, %s34
      %s38 = sphi 0, %s35
      %s56 = sphi 0, %s58
      %s59 = sphi 0, %s56
      %s60 = sphi 0, %s59
      %s76 = sphi 0, %s60
      %s84 = sphi 0, %s86
      %s87 = sphi 0, %s84
      %s88 = sphi 0, %s87
      %s104 = sphi 0, %s88
      %s110 = sphi 0, %s112
      %s113 = sphi 0, %s110
      %s114 = sphi 0, %s113
      %s130 = sphi 0, %s114
      %s136 = sphi 0, %s138
      %s139 = sphi 0, %s136
      %s140 = sphi 0, %s139
      %s156 = sphi 0, %s140
      %s164 = sphi 0, %s166
      %s167 = sphi 0, %s164
      %s168 = sphi 0, %s167
      %s184 = sphi 0, %s168
      %s192 = sphi 0, %s194
      %s195 = sphi 0, %s192
      %s196 = sphi 0, %s195
      %s212 = sphi 0, %s196
    $region4: #{tpu_custom_call.1} parent=1 // loop_header_branch
      %26 = sbr.rel (%p24) target = $region8
    $region5: #{tpu_custom_call.1} parent=1 // loop_body
      %s28 = ssub.s32 %s23, 1
      %s29 = ssub.s32 %s23, 2
      %s39 = sadd.s32 1, %s32
      %p40 = scmp.ge.s32.totalorder %s39, 1
      %s41 = scalar_select %p40, 0, %s39
      %s42 = sadd.s32 1, %s31
      %s43 = scalar_select %p40, %s42, %s31
      %p44 = scmp.ge.s32.totalorder %s43, 1
      %s45 = scalar_select %p44, 0, %s43
      %s46 = sadd.s32 1, %s30
      %s47 = scalar_select %p44, %s46, %s30
      %p48 = scmp.ge.s32.totalorder %s47, 2
      %s49 = scalar_select %p48, 0, %s47
      %s50 = ssub.s32 %s30, %s49
      %s51 = ssub.s32 %s31, %s45
      %s52 = sor.u32 %s50, %s51
      %s53 = ssub.s32 %s32, %s41
      %s54 = sor.u32 %s52, %s53
      %p55 = scmp.eq.s32.totalorder %s54, 0
      %s57 = sadd.s32 %s56, 1
      %s58 = scalar_select %p55, %s56, %s57
      %p61 = pneg %p55
      %p62 = scmp.eq.s32.totalorder %s23, 1
      %p63 = por %p61, %p62
      %p64 = scmp.ne.s32.totalorder %s56, %s59
      %p65 = scmp.eq.s32.totalorder %s23, 0
      %p66 = por %p64, %p65
      %p67 = scmp.ne.s32.totalorder %s56, %s59
      %p68 = scmp.eq.s32.totalorder %s28, 1
      %p69 = por %p67, %p68
      %p70 = scmp.ne.s32.totalorder %s59, %s60
      %p71 = scmp.eq.s32.totalorder %s28, 0
      %p72 = por %p70, %p71
      %p73 = scmp.ne.s32.totalorder %s59, %s60
      %p74 = scmp.eq.s32.totalorder %s29, 1
      %p75 = por %p73, %p74
      %p77 = scmp.ne.s32.totalorder %s60, %s76
      %p78 = scmp.eq.s32.totalorder %s29, 0
      %p79 = por %p77, %p78
      %s80 = ssub.s32 %s30, %s49
      %s81 = ssub.s32 %s32, %s41
      %s82 = sor.u32 %s80, %s81
      %p83 = scmp.eq.s32.totalorder %s82, 0
      %s85 = sadd.s32 %s84, 1
      %s86 = scalar_select %p83, %s84, %s85
      %p89 = pneg %p83
      %p90 = scmp.eq.s32.totalorder %s23, 1
      %p91 = por %p89, %p90
      %p92 = scmp.ne.s32.totalorder %s84, %s87
      %p93 = scmp.eq.s32.totalorder %s23, 0
      %p94 = por %p92, %p93
      %p95 = scmp.ne.s32.totalorder %s84, %s87
      %p96 = scmp.eq.s32.totalorder %s28, 1
      %p97 = por %p95, %p96
      %p98 = scmp.ne.s32.totalorder %s87, %s88
      %p99 = scmp.eq.s32.totalorder %s28, 0
      %p100 = por %p98, %p99
      %p101 = scmp.ne.s32.totalorder %s87, %s88
      %p102 = scmp.eq.s32.totalorder %s29, 1
      %p103 = por %p101, %p102
      %p105 = scmp.ne.s32.totalorder %s88, %s104
      %p106 = scmp.eq.s32.totalorder %s29, 0
      %p107 = por %p105, %p106
      %s108 = ssub.s32 %s30, %s49
      %p109 = scmp.eq.s32.totalorder %s108, 0
      %s111 = sadd.s32 %s110, 1
      %s112 = scalar_select %p109, %s110, %s111
      %p115 = pneg %p109
      %p116 = scmp.eq.s32.totalorder %s23, 1
      %p117 = por %p115, %p116
      %p118 = scmp.ne.s32.totalorder %s110, %s113
      %p119 = scmp.eq.s32.totalorder %s23, 0
      %p120 = por %p118, %p119
      %p121 = scmp.ne.s32.totalorder %s110, %s113
      %p122 = scmp.eq.s32.totalorder %s28, 1
      %p123 = por %p121, %p122
      %p124 = scmp.ne.s32.totalorder %s113, %s114
      %p125 = scmp.eq.s32.totalorder %s28, 0
      %p126 = por %p124, %p125
      %p127 = scmp.ne.s32.totalorder %s113, %s114
      %p128 = scmp.eq.s32.totalorder %s29, 1
      %p129 = por %p127, %p128
      %p131 = scmp.ne.s32.totalorder %s114, %s130
      %p132 = scmp.eq.s32.totalorder %s29, 0
      %p133 = por %p131, %p132
      %s134 = ssub.s32 %s30, %s49
      %p135 = scmp.eq.s32.totalorder %s134, 0
      %s137 = sadd.s32 %s136, 1
      %s138 = scalar_select %p135, %s136, %s137
      %p141 = pneg %p135
      %p142 = scmp.eq.s32.totalorder %s23, 1
      %p143 = por %p141, %p142
      %p144 = scmp.ne.s32.totalorder %s136, %s139
      %p145 = scmp.eq.s32.totalorder %s23, 0
      %p146 = por %p144, %p145
      %p147 = scmp.ne.s32.totalorder %s136, %s139
      %p148 = scmp.eq.s32.totalorder %s28, 1
      %p149 = por %p147, %p148
      %p150 = scmp.ne.s32.totalorder %s139, %s140
      %p151 = scmp.eq.s32.totalorder %s28, 0
      %p152 = por %p150, %p151
      %p153 = scmp.ne.s32.totalorder %s139, %s140
      %p154 = scmp.eq.s32.totalorder %s29, 1
      %p155 = por %p153, %p154
      %p157 = scmp.ne.s32.totalorder %s140, %s156
      %p158 = scmp.eq.s32.totalorder %s29, 0
      %p159 = por %p157, %p158
      %s160 = ssub.s32 %s30, %s49
      %s161 = ssub.s32 %s31, %s45
      %s162 = sor.u32 %s160, %s161
      %p163 = scmp.eq.s32.totalorder %s162, 0
      %s165 = sadd.s32 %s164, 1
      %s166 = scalar_select %p163, %s164, %s165
      %p169 = pneg %p163
      %p170 = scmp.eq.s32.totalorder %s23, 1
      %p171 = por %p169, %p170
      %p172 = scmp.ne.s32.totalorder %s164, %s167
      %p173 = scmp.eq.s32.totalorder %s23, 0
      %p174 = por %p172, %p173
      %p175 = scmp.ne.s32.totalorder %s164, %s167
      %p176 = scmp.eq.s32.totalorder %s28, 1
      %p177 = por %p175, %p176
      %p178 = scmp.ne.s32.totalorder %s167, %s168
      %p179 = scmp.eq.s32.totalorder %s28, 0
      %p180 = por %p178, %p179
      %p181 = scmp.ne.s32.totalorder %s167, %s168
      %p182 = scmp.eq.s32.totalorder %s29, 1
      %p183 = por %p181, %p182
      %p185 = scmp.ne.s32.totalorder %s168, %s184
      %p186 = scmp.eq.s32.totalorder %s29, 0
      %p187 = por %p185, %p186
      %s188 = ssub.s32 %s30, %s49
      %s189 = ssub.s32 %s31, %s45
      %s190 = sor.u32 %s188, %s189
      %p191 = scmp.eq.s32.totalorder %s190, 0
      %s193 = sadd.s32 %s192, 1
      %s194 = scalar_select %p191, %s192, %s193
      %p197 = pneg %p191
      %p198 = scmp.eq.s32.totalorder %s23, 1
      %p199 = por %p197, %p198
      %p200 = scmp.ne.s32.totalorder %s192, %s195
      %p201 = scmp.eq.s32.totalorder %s23, 0
      %p202 = por %p200, %p201
      %p203 = scmp.ne.s32.totalorder %s192, %s195
      %p204 = scmp.eq.s32.totalorder %s28, 1
      %p205 = por %p203, %p204
      %p206 = scmp.ne.s32.totalorder %s195, %s196
      %p207 = scmp.eq.s32.totalorder %s28, 0
      %p208 = por %p206, %p207
      %p209 = scmp.ne.s32.totalorder %s195, %s196
      %p210 = scmp.eq.s32.totalorder %s29, 1
      %p211 = por %p209, %p210
      %p213 = scmp.ne.s32.totalorder %s196, %s212
      %p214 = scmp.eq.s32.totalorder %s29, 0
      %p215 = por %p213, %p214
      %p216 = scmp.le.s32.totalorder 1, %s23
      %p217 = scmp.lt.s32.totalorder %s23, 3
      %p218 = pnand %p216, %p217
      %p219 = pneg %p218
      // Predicated region
      $region9: #{tpu_custom_call.1} parent=5 // pred_check
        _
      $region10: #{tpu_custom_call.1} parent=5 // pred_check_branch
        %221 = sbr.rel (%p218) target = $region12
      $region11: #{tpu_custom_call.1} parent=5 // pred_region
        %s222 = ssub.s32 %s23, 1
      $region12: #{tpu_custom_call.1} parent=5 // pred_fallthru
        _
      %p223 = scmp.lt.s32.totalorder %s23, 2
      // Predicated region
      $region13: #{tpu_custom_call.1} parent=5 // pred_check
        %p224 = pneg %p223
      $region14: #{tpu_custom_call.1} parent=5 // pred_check_branch
        %226 = sbr.rel (%p224) target = $region16
      $region15: #{tpu_custom_call.1} parent=5 // pred_region
        // Predicated region
        $region17: #{tpu_custom_call.1} parent=15 // pred_check
          %p227 = pneg %p66
        $region18: #{tpu_custom_call.1} parent=15 // pred_check_branch
          %229 = sbr.rel (%p227) target = $region20
        $region19: #{tpu_custom_call.1} parent=15 // pred_region
          %s230 = sand.u32 %s56, 1
          %s231 = scalar_lea.sflag [#allocation4], %s230
          %s232 = sand.u32 %s56, 1
          %s233 = smul.addr %s232, 64
          %s234 = scalar_lea.vmem [#allocation3], %s233
          %s235 = smul.u32 16, %s31
          %s237 = ssub.s32 1024, 1024
          %238 = vsyncadd %s231, %s237
          %s239 = sadd.s32 %s32, %s235
          %s240 = smul.addr %s30, 16
          %s241 = sadd.s32 %s239, %s240
          %s242 = smul.addr %s241, 64
          %s243 = scalar_lea.hbm %s0, %s242
          %s244 = sshll.u32 %s234, 4
          %s245 = int_to_ptr.vmem [resolvable:$true] %s244
          %250 = dma.hbm_to_vmem [thread:$0]  %s243, 1024, %s245, %s231, 64, 64, 4
        $region20: #{tpu_custom_call.1} parent=15 // pred_fallthru
          _
        // Predicated region
        $region21: #{tpu_custom_call.1} parent=15 // pred_check
          %p251 = pneg %p94
        $region22: #{tpu_custom_call.1} parent=15 // pred_check_branch
          %253 = sbr.rel (%p251) target = $region24
        $region23: #{tpu_custom_call.1} parent=15 // pred_region
          %s254 = sand.u32 %s23, 1
          %s255 = scalar_lea.sflag [#allocation7], %s254
          %s256 = sand.u32 %s84, 1
          %s257 = smul.addr %s256, 64
          %s258 = scalar_lea.vmem [#allocation6], %s257
          %s259 = smul.u32 16, %s32
          %s261 = ssub.s32 1024, 1024
          %262 = vsyncadd %s255, %s261
          %s263 = smul.addr %s30, 16
          %s264 = sadd.s32 %s259, %s263
          %s265 = smul.addr %s264, 64
          %s266 = scalar_lea.hbm %s1, %s265
          %s267 = sshll.u32 %s258, 4
          %s268 = int_to_ptr.vmem [resolvable:$true] %s267
          %273 = dma.hbm_to_vmem [thread:$0]  %s266, 1024, %s268, %s255, 64, 64, 4
        $region24: #{tpu_custom_call.1} parent=15 // pred_fallthru
          _
        // Predicated region
        $region25: #{tpu_custom_call.1} parent=15 // pred_check
          %p274 = pneg %p120
        $region26: #{tpu_custom_call.1} parent=15 // pred_check_branch
          %276 = sbr.rel (%p274) target = $region28
        $region27: #{tpu_custom_call.1} parent=15 // pred_region
          %p277 = scmp.lt.s32.totalorder %s30, 1
          %s278 = scalar_select %p277, %s30, 1
          %s279 = scalar_lea.vmem %s2, %s278
        $region28: #{tpu_custom_call.1} parent=15 // pred_fallthru
          _
        // Predicated region
        $region29: #{tpu_custom_call.1} parent=15 // pred_check
          %p280 = pneg %p146
        $region30: #{tpu_custom_call.1} parent=15 // pred_check_branch
          %282 = sbr.rel (%p280) target = $region32
        $region31: #{tpu_custom_call.1} parent=15 // pred_region
          %s283 = sand.u32 %s23, 1
          %s284 = scalar_lea.sflag [#allocation7], %s283
          %s285 = sand.u32 %s136, 1
          %s286 = smul.addr %s285, 64
          %s287 = scalar_lea.vmem [#allocation8], %s286
          %s289 = ssub.s32 1024, 1024
          %290 = vsyncadd %s284, %s289
          %s291 = smul.addr %s30, 16
          %s292 = smul.addr %s291, 64
          %s293 = scalar_lea.hbm %s3, %s292
          %s294 = sshll.u32 %s287, 4
          %s295 = int_to_ptr.vmem [resolvable:$true] %s294
          %300 = dma.hbm_to_vmem [thread:$0]  %s293, 1024, %s295, %s284, 64, 64, 4
        $region32: #{tpu_custom_call.1} parent=15 // pred_fallthru
          _
        // Predicated region
        $region33: #{tpu_custom_call.1} parent=15 // pred_check
          %p301 = pneg %p174
        $region34: #{tpu_custom_call.1} parent=15 // pred_check_branch
          %303 = sbr.rel (%p301) target = $region36
        $region35: #{tpu_custom_call.1} parent=15 // pred_region
          %s304 = sand.u32 %s164, 1
          %s305 = scalar_lea.sflag [#allocation10], %s304
          %s306 = sand.u32 %s164, 1
          %s307 = smul.addr %s306, 64
          %s308 = scalar_lea.vmem [#allocation9], %s307
          %s309 = smul.u32 16, %s31
          %s311 = ssub.s32 1024, 1024
          %312 = vsyncadd %s305, %s311
          %s313 = smul.addr %s30, 16
          %s314 = sadd.s32 %s309, %s313
          %s315 = smul.addr %s314, 64
          %s316 = scalar_lea.hbm %s4, %s315
          %s317 = sshll.u32 %s308, 4
          %s318 = int_to_ptr.vmem [resolvable:$true] %s317
          %323 = dma.hbm_to_vmem [thread:$0]  %s316, 1024, %s318, %s305, 64, 64, 4
        $region36: #{tpu_custom_call.1} parent=15 // pred_fallthru
          _
      $region16: #{tpu_custom_call.1} parent=5 // pred_fallthru
        _
      %p324 = scmp.le.s32.totalorder 1, %s23
      %p325 = scmp.lt.s32.totalorder %s23, 3
      %p326 = pnand %p324, %p325
      %p327 = pneg %p326
      // Predicated region
      $region37: #{tpu_custom_call.1} parent=5 // pred_check
        _
      $region38: #{tpu_custom_call.1} parent=5 // pred_check_branch
        %329 = sbr.rel (%p326) target = $region40
      $region39: #{tpu_custom_call.1} parent=5 // pred_region
        %s330 = ssub.s32 %s23, 1
        %s331 = sand.u32 %s59, 1
        %s332 = scalar_lea.sflag [#allocation4], %s331
        %s333 = sand.u32 %s59, 1
        %s334 = smul.addr %s333, 64
        %s335 = scalar_lea.vmem [#allocation3], %s334
        // Predicated region
        $region41: #{tpu_custom_call.1} parent=39 // pred_check
          %p336 = pneg %p72
        $region42: #{tpu_custom_call.1} parent=39 // pred_check_branch
          %338 = sbr.rel (%p336) target = $region44
        $region43: #{tpu_custom_call.1} parent=39 // pred_region
          %339 = dma.done %s332, 1024
        $region44: #{tpu_custom_call.1} parent=39 // pred_fallthru
          _
        %s340 = sand.u32 %s28, 1
        %s341 = scalar_lea.sflag [#allocation7], %s340
        %s342 = sand.u32 %s87, 1
        %s343 = smul.addr %s342, 64
        %s344 = scalar_lea.vmem [#allocation6], %s343
        // Predicated region
        $region45: #{tpu_custom_call.1} parent=39 // pred_check
          %p345 = pneg %p100
        $region46: #{tpu_custom_call.1} parent=39 // pred_check_branch
          %347 = sbr.rel (%p345) target = $region48
        $region47: #{tpu_custom_call.1} parent=39 // pred_region
          %348 = dma.done %s341, 1024
        $region48: #{tpu_custom_call.1} parent=39 // pred_fallthru
          _
        %s349 = sand.u32 %s28, 1
        %s350 = scalar_lea.sflag [#allocation7], %s349
        %s351 = sand.u32 %s139, 1
        %s352 = smul.addr %s351, 64
        %s353 = scalar_lea.vmem [#allocation8], %s352
        // Predicated region
        $region49: #{tpu_custom_call.1} parent=39 // pred_check
          %p354 = pneg %p152
        $region50: #{tpu_custom_call.1} parent=39 // pred_check_branch
          %356 = sbr.rel (%p354) target = $region52
        $region51: #{tpu_custom_call.1} parent=39 // pred_region
          %357 = dma.done %s350, 1024
        $region52: #{tpu_custom_call.1} parent=39 // pred_fallthru
          _
        %s358 = sand.u32 %s167, 1
        %s359 = scalar_lea.sflag [#allocation10], %s358
        %s360 = sand.u32 %s167, 1
        %s361 = smul.addr %s360, 64
        %s362 = scalar_lea.vmem [#allocation9], %s361
        // Predicated region
        $region53: #{tpu_custom_call.1} parent=39 // pred_check
          %p363 = pneg %p180
        $region54: #{tpu_custom_call.1} parent=39 // pred_check_branch
          %365 = sbr.rel (%p363) target = $region56
        $region55: #{tpu_custom_call.1} parent=39 // pred_region
          %366 = dma.done %s359, 1024
        $region56: #{tpu_custom_call.1} parent=39 // pred_fallthru
          _
        %s367 = sand.u32 %s59, 1
        %s368 = scalar_lea.sflag [#allocation4], %s367
        %s369 = sand.u32 %s59, 1
        %s370 = smul.addr %s369, 64
        %s371 = scalar_lea.vmem [#allocation3], %s370
        %p372 = pneg %p72
        %p373 = pneg %p69
        %s374 = sand.u32 %s28, 1
        %s375 = scalar_lea.sflag [#allocation7], %s374
        %s376 = sand.u32 %s87, 1
        %s377 = smul.addr %s376, 64
        %s378 = scalar_lea.vmem [#allocation6], %s377
        %p379 = pneg %p100
        %p380 = pneg %p97
        %p381 = scmp.lt.s32.totalorder %s33, 1
        %s382 = scalar_select %p381, %s33, 1
        %s383 = scalar_lea.vmem %s2, %s382
        %p384 = pneg %p126
        %p385 = pneg %p123
        %s386 = sand.u32 %s28, 1
        %s387 = scalar_lea.sflag [#allocation7], %s386
        %s388 = sand.u32 %s139, 1
        %s389 = smul.addr %s388, 64
        %s390 = scalar_lea.vmem [#allocation8], %s389
        %p391 = pneg %p152
        %p392 = pneg %p149
        %s393 = sand.u32 %s167, 1
        %s394 = scalar_lea.sflag [#allocation10], %s393
        %s395 = sand.u32 %s167, 1
        %s396 = smul.addr %s395, 64
        %s397 = scalar_lea.vmem [#allocation9], %s396
        %p398 = pneg %p180
        %p399 = pneg %p177
        %p400 = pneg %p208
        %p401 = pneg %p205
        %s402 = sand.u32 %s195, 1
        %s403 = scalar_lea.sflag [#allocation5], %s402
        %s404 = sand.u32 %s195, 1
        %s405 = smul.addr %s404, 64
        %s406 = scalar_lea.vmem [#allocation11], %s405
        %s407 = smul.u32 16, %s34
        %s408 = smul.u32 16, %s35
        %p409 = scmp.lt.s32.totalorder %s33, 1
        %s410 = scalar_select %p409, %s33, 1
        %s411 = scalar_lea.vmem %s2, %s410
        %s412 = smul.u32 16, %s34
        %s413 = smul.u32 16, %s34
        %p415 = scmp.eq.s32.totalorder %s35, 0
        // Predicated region
        $region57: #{tpu_custom_call.1} parent=39 // pred_check
          %p416 = pneg %p415
        $region58: #{tpu_custom_call.1} parent=39 // pred_check_branch
          %418 = sbr.rel (%p416) target = $region60
        $region59: #{tpu_custom_call.1} parent=39 // pred_region
          %419 = vst [vmem:[#allocation2] sm:$0xff] 0.0
          %420 = vst [vmem:[#allocation2 + $0x8] sm:$0xff] 0.0
          %421 = vst [vmem:[#allocation2 + $0x10] sm:$0xff] 0.0
          %422 = vst [vmem:[#allocation2 + $0x18] sm:$0xff] 0.0
          %423 = vst [vmem:[#allocation2 + $0x20] sm:$0xff] 0.0
          %424 = vst [vmem:[#allocation2 + $0x28] sm:$0xff] 0.0
          %425 = vst [vmem:[#allocation2 + $0x30] sm:$0xff] 0.0
          %426 = vst [vmem:[#allocation2 + $0x38] sm:$0xff] 0.0
          %427 = vst [vmem:[#allocation2 + $0x40] sm:$0xff] 0.0
          %428 = vst [vmem:[#allocation2 + $0x48] sm:$0xff] 0.0
          %429 = vst [vmem:[#allocation2 + $0x50] sm:$0xff] 0.0
          %430 = vst [vmem:[#allocation2 + $0x58] sm:$0xff] 0.0
          %431 = vst [vmem:[#allocation2 + $0x60] sm:$0xff] 0.0
          %432 = vst [vmem:[#allocation2 + $0x68] sm:$0xff] 0.0
          %433 = vst [vmem:[#allocation2 + $0x70] sm:$0xff] 0.0
          %434 = vst [vmem:[#allocation2 + $0x78] sm:$0xff] 0.0
        $region60: #{tpu_custom_call.1} parent=39 // pred_fallthru
          _
        %v435 = vld [vmem:[#allocation2] sm:$0xff]
        %v436 = vld [vmem:[#allocation2 + $0x8] sm:$0xff]
        %v437 = vld [vmem:[#allocation2 + $0x10] sm:$0xff]
        %v438 = vld [vmem:[#allocation2 + $0x18] sm:$0xff]
        %v439 = vld [vmem:[#allocation2 + $0x20] sm:$0xff]
        %v440 = vld [vmem:[#allocation2 + $0x28] sm:$0xff]
        %v441 = vld [vmem:[#allocation2 + $0x30] sm:$0xff]
        %v442 = vld [vmem:[#allocation2 + $0x38] sm:$0xff]
        %v443 = vld [vmem:[#allocation2 + $0x40] sm:$0xff]
        %v444 = vld [vmem:[#allocation2 + $0x48] sm:$0xff]
        %v445 = vld [vmem:[#allocation2 + $0x50] sm:$0xff]
        %v446 = vld [vmem:[#allocation2 + $0x58] sm:$0xff]
        %v447 = vld [vmem:[#allocation2 + $0x60] sm:$0xff]
        %v448 = vld [vmem:[#allocation2 + $0x68] sm:$0xff]
        %v449 = vld [vmem:[#allocation2 + $0x70] sm:$0xff]
        %v450 = vld [vmem:[#allocation2 + $0x78] sm:$0xff]
        %v451 = vld [vmem:[%s335] sm:$0xf]
        %v452 = vld [vmem:[%s335 + $0x4] sm:$0xf]
        %v453 = vld [vmem:[%s335 + $0x8] sm:$0xf]
        %v454 = vld [vmem:[%s335 + $0xc] sm:$0xf]
        %v455 = vld [vmem:[%s335 + $0x10] sm:$0xf]
        %v456 = vld [vmem:[%s335 + $0x14] sm:$0xf]
        %v457 = vld [vmem:[%s335 + $0x18] sm:$0xf]
        %v458 = vld [vmem:[%s335 + $0x1c] sm:$0xf]
        %v459 = vld [vmem:[%s335 + $0x20] sm:$0xf]
        %v460 = vld [vmem:[%s335 + $0x24] sm:$0xf]
        %v461 = vld [vmem:[%s335 + $0x28] sm:$0xf]
        %v462 = vld [vmem:[%s335 + $0x2c] sm:$0xf]
        %v463 = vld [vmem:[%s335 + $0x30] sm:$0xf]
        %v464 = vld [vmem:[%s335 + $0x34] sm:$0xf]
        %v465 = vld [vmem:[%s335 + $0x38] sm:$0xf]
        %v466 = vld [vmem:[%s335 + $0x3c] sm:$0xf]
        %v467 = vld [vmem:[%s344] sm:$0xf]
        %v468 = vld [vmem:[%s344 + $0x4] sm:$0xf]
        %v469 = vld [vmem:[%s344 + $0x8] sm:$0xf]
        %v470 = vld [vmem:[%s344 + $0xc] sm:$0xf]
        %v471 = vld [vmem:[%s344 + $0x10] sm:$0xf]
        %v472 = vld [vmem:[%s344 + $0x14] sm:$0xf]
        %v473 = vld [vmem:[%s344 + $0x18] sm:$0xf]
        %v474 = vld [vmem:[%s344 + $0x1c] sm:$0xf]
        %v475 = vld [vmem:[%s344 + $0x20] sm:$0xf]
        %v476 = vld [vmem:[%s344 + $0x24] sm:$0xf]
        %v477 = vld [vmem:[%s344 + $0x28] sm:$0xf]
        %v478 = vld [vmem:[%s344 + $0x2c] sm:$0xf]
        %v479 = vld [vmem:[%s344 + $0x30] sm:$0xf]
        %v480 = vld [vmem:[%s344 + $0x34] sm:$0xf]
        %v481 = vld [vmem:[%s344 + $0x38] sm:$0xf]
        %v482 = vld [vmem:[%s344 + $0x3c] sm:$0xf]
        %v499 = vunpack.c.l.b16 %v451
        %v500 = vunpack.c.l.b16 %v452
        %v501 = vunpack.c.l.b16 %v453
        %v502 = vunpack.c.l.b16 %v454
        %v503 = vunpack.c.l.b16 %v455
        %v504 = vunpack.c.l.b16 %v456
        %v505 = vunpack.c.l.b16 %v457
        %v506 = vunpack.c.l.b16 %v458
        %v507 = vunpack.c.l.b16 %v459
        %v508 = vunpack.c.l.b16 %v460
        %v509 = vunpack.c.l.b16 %v461
        %v510 = vunpack.c.l.b16 %v462
        %v511 = vunpack.c.l.b16 %v463
        %v512 = vunpack.c.l.b16 %v464
        %v513 = vunpack.c.l.b16 %v465
        %v514 = vunpack.c.l.b16 %v466
        %v515 = vpack.c.b16 %v500, %v499
        %v516 = vpack.c.b16 %v502, %v501
        %v517 = vpack.c.b16 %v504, %v503
        %v518 = vpack.c.b16 %v506, %v505
        %v519 = vpack.c.b16 %v508, %v507
        %v520 = vpack.c.b16 %v510, %v509
        %v521 = vpack.c.b16 %v512, %v511
        %v522 = vpack.c.b16 %v514, %v513
        %v547 = vunpack.c.l.b16 %v467
        %v548 = vunpack.c.l.b16 %v468
        %v549 = vunpack.c.l.b16 %v469
        %v550 = vunpack.c.l.b16 %v470
        %v551 = vunpack.c.l.b16 %v471
        %v552 = vunpack.c.l.b16 %v472
        %v553 = vunpack.c.l.b16 %v473
        %v554 = vunpack.c.l.b16 %v474
        %v555 = vunpack.c.l.b16 %v475
        %v556 = vunpack.c.l.b16 %v476
        %v557 = vunpack.c.l.b16 %v477
        %v558 = vunpack.c.l.b16 %v478
        %v559 = vunpack.c.l.b16 %v479
        %v560 = vunpack.c.l.b16 %v480
        %v561 = vunpack.c.l.b16 %v481
        %v562 = vunpack.c.l.b16 %v482
        %v563 = vpack.c.b16 %v548, %v547
        %v564 = vpack.c.b16 %v550, %v549
        %v565 = vpack.c.b16 %v552, %v551
        %v566 = vpack.c.b16 %v554, %v553
        %v567 = vpack.c.b16 %v556, %v555
        %v568 = vpack.c.b16 %v558, %v557
        %v569 = vpack.c.b16 %v560, %v559
        %v570 = vpack.c.b16 %v562, %v561
        %579 = vmatprep.subr.bf16.mxu0 0
        %580 = vmatpush1.bf16.msra.mxu0 %v563
        %581 = vmatprep.subr.bf16.mxu0 0
        %582 = vmatpush1.bf16.msra.mxu0 %v564
        %583 = vmatprep.subr.bf16.mxu0 0
        %584 = vmatpush1.bf16.msra.mxu0 %v565
        %585 = vmatprep.subr.bf16.mxu0 0
        %586 = vmatpush1.bf16.msra.mxu0 %v566
        %587 = vmatprep.subr.bf16.mxu0 0
        %588 = vmatpush1.bf16.msra.mxu0 %v567
        %589 = vmatprep.subr.bf16.mxu0 0
        %590 = vmatpush1.bf16.msra.mxu0 %v568
        %591 = vmatprep.subr.bf16.mxu0 0
        %592 = vmatpush1.bf16.msra.mxu0 %v569
        %593 = vmatprep.subr.bf16.mxu0 0
        %594 = vmatpush1.bf16.msra.mxu0 %v570
        %595 = vmatprep.subr.bf16.mxu0 0
        %596 = vmatpush1.bf16.msra.mxu0 0
        %597 = vmatprep.subr.bf16.mxu0 0
        %598 = vmatpush1.bf16.msra.mxu0 0
        %599 = vmatprep.subr.bf16.mxu0 0
        %600 = vmatpush1.bf16.msra.mxu0 0
        %601 = vmatprep.subr.bf16.mxu0 0
        %602 = vmatpush1.bf16.msra.mxu0 0
        %603 = vmatprep.subr.bf16.mxu0 0
        %604 = vmatpush1.bf16.msra.mxu0 0
        %605 = vmatprep.subr.bf16.mxu0 0
        %606 = vmatpush1.bf16.msra.mxu0 0
        %607 = vmatprep.subr.bf16.mxu0 0
        %608 = vmatpush1.bf16.msra.mxu0 0
        %609 = vmatprep.subr.bf16.mxu0 0
        %610 = vmatpush1.bf16.msra.mxu0 0
        %611 = vmatprep.mubr.bf16.mxu0 0
        %612 = vmatmul.mubr.bf16.gmra.mrb[0].mxu0 %v515
        %v613 = vpop.f32.mrb[0].mxu0
        %v614 = vadd.f32 0.0, %v613
        %v615 = vpop.f32.mrb[0].mxu0
        %v616 = vpop.f32.mrb[0].mxu0
        %v617 = vadd.f32 0.0, %v616
        %v618 = vpop.f32.mrb[0].mxu0
        %619 = vmatprep.mubr.bf16.mxu0 0
        %620 = vmatmul.mubr.bf16.gmra.mrb[0].mxu0 %v516
        %v621 = vpop.f32.mrb[0].mxu0
        %v622 = vadd.f32 0.0, %v621
        %v623 = vpop.f32.mrb[0].mxu0
        %v624 = vpop.f32.mrb[0].mxu0
        %v625 = vadd.f32 0.0, %v624
        %v626 = vpop.f32.mrb[0].mxu0
        %627 = vmatprep.mubr.bf16.mxu0 0
        %628 = vmatmul.mubr.bf16.gmra.mrb[0].mxu0 %v517
        %v629 = vpop.f32.mrb[0].mxu0
        %v630 = vadd.f32 0.0, %v629
        %v631 = vpop.f32.mrb[0].mxu0
        %v632 = vpop.f32.mrb[0].mxu0
        %v633 = vadd.f32 0.0, %v632
        %v634 = vpop.f32.mrb[0].mxu0
        %635 = vmatprep.mubr.bf16.mxu0 0
        %636 = vmatmul.mubr.bf16.gmra.mrb[0].mxu0 %v518
        %v637 = vpop.f32.mrb[0].mxu0
        %v638 = vadd.f32 0.0, %v637
        %v639 = vpop.f32.mrb[0].mxu0
        %v640 = vpop.f32.mrb[0].mxu0
        %v641 = vadd.f32 0.0, %v640
        %v642 = vpop.f32.mrb[0].mxu0
        %643 = vmatprep.mubr.bf16.mxu0 0
        %644 = vmatmul.mubr.bf16.gmra.mrb[0].mxu0 %v519
        %v645 = vpop.f32.mrb[0].mxu0
        %v646 = vadd.f32 0.0, %v645
        %v647 = vpop.f32.mrb[0].mxu0
        %v648 = vpop.f32.mrb[0].mxu0
        %v649 = vadd.f32 0.0, %v648
        %v650 = vpop.f32.mrb[0].mxu0
        %651 = vmatprep.mubr.bf16.mxu0 0
        %652 = vmatmul.mubr.bf16.gmra.mrb[0].mxu0 %v520
        %v653 = vpop.f32.mrb[0].mxu0
        %v654 = vadd.f32 0.0, %v653
        %v655 = vpop.f32.mrb[0].mxu0
        %v656 = vpop.f32.mrb[0].mxu0
        %v657 = vadd.f32 0.0, %v656
        %v658 = vpop.f32.mrb[0].mxu0
        %659 = vmatprep.mubr.bf16.mxu0 0
        %660 = vmatmul.mubr.bf16.gmra.mrb[0].mxu0 %v521
        %v661 = vpop.f32.mrb[0].mxu0
        %v662 = vadd.f32 0.0, %v661
        %v663 = vpop.f32.mrb[0].mxu0
        %v664 = vpop.f32.mrb[0].mxu0
        %v665 = vadd.f32 0.0, %v664
        %v666 = vpop.f32.mrb[0].mxu0
        %667 = vmatprep.mubr.bf16.mxu0 0
        %668 = vmatmul.mubr.bf16.gmra.mrb[0].mxu0 %v522
        %v669 = vpop.f32.mrb[0].mxu0
        %v670 = vadd.f32 0.0, %v669
        %v671 = vpop.f32.mrb[0].mxu0
        %v672 = vpop.f32.mrb[0].mxu0
        %v673 = vadd.f32 0.0, %v672
        %v674 = vpop.f32.mrb[0].mxu0
        %675 = vdwg.mxu0
        %v676 = vadd.f32 %v435, %v614
        %v677 = vadd.f32 %v436, %v617
        %v678 = vadd.f32 %v437, %v622
        %v679 = vadd.f32 %v438, %v625
        %v680 = vadd.f32 %v439, %v630
        %v681 = vadd.f32 %v440, %v633
        %v682 = vadd.f32 %v441, %v638
        %v683 = vadd.f32 %v442, %v641
        %v684 = vadd.f32 %v443, %v646
        %v685 = vadd.f32 %v444, %v649
        %v686 = vadd.f32 %v445, %v654
        %v687 = vadd.f32 %v446, %v657
        %v688 = vadd.f32 %v447, %v662
        %v689 = vadd.f32 %v448, %v665
        %v690 = vadd.f32 %v449, %v670
        %v691 = vadd.f32 %v450, %v673
        %692 = vst [vmem:[#allocation2] sm:$0xff] %v676
        %693 = vst [vmem:[#allocation2 + $0x8] sm:$0xff] %v677
        %694 = vst [vmem:[#allocation2 + $0x10] sm:$0xff] %v678
        %695 = vst [vmem:[#allocation2 + $0x18] sm:$0xff] %v679
        %696 = vst [vmem:[#allocation2 + $0x20] sm:$0xff] %v680
        %697 = vst [vmem:[#allocation2 + $0x28] sm:$0xff] %v681
        %698 = vst [vmem:[#allocation2 + $0x30] sm:$0xff] %v682
        %699 = vst [vmem:[#allocation2 + $0x38] sm:$0xff] %v683
        %700 = vst [vmem:[#allocation2 + $0x40] sm:$0xff] %v684
        %701 = vst [vmem:[#allocation2 + $0x48] sm:$0xff] %v685
        %702 = vst [vmem:[#allocation2 + $0x50] sm:$0xff] %v686
        %703 = vst [vmem:[#allocation2 + $0x58] sm:$0xff] %v687
        %704 = vst [vmem:[#allocation2 + $0x60] sm:$0xff] %v688
        %705 = vst [vmem:[#allocation2 + $0x68] sm:$0xff] %v689
        %706 = vst [vmem:[#allocation2 + $0x70] sm:$0xff] %v690
        %707 = vst [vmem:[#allocation2 + $0x78] sm:$0xff] %v691
        // Predicated region
        $region61: #{tpu_custom_call.1} parent=39 // pred_check
          %p708 = pneg %p415
        $region62: #{tpu_custom_call.1} parent=39 // pred_check_branch
          %710 = sbr.rel (%p708) target = $region64
        $region63: #{tpu_custom_call.1} parent=39 // pred_region
          %v711 = vld [vmem:[#allocation2] sm:$0xff]
          %v712 = vld [vmem:[#allocation2 + $0x8] sm:$0xff]
          %v713 = vld [vmem:[#allocation2 + $0x10] sm:$0xff]
          %v714 = vld [vmem:[#allocation2 + $0x18] sm:$0xff]
          %v715 = vld [vmem:[#allocation2 + $0x20] sm:$0xff]
          %v716 = vld [vmem:[#allocation2 + $0x28] sm:$0xff]
          %v717 = vld [vmem:[#allocation2 + $0x30] sm:$0xff]
          %v718 = vld [vmem:[#allocation2 + $0x38] sm:$0xff]
          %v719 = vld [vmem:[#allocation2 + $0x40] sm:$0xff]
          %v720 = vld [vmem:[#allocation2 + $0x48] sm:$0xff]
          %v721 = vld [vmem:[#allocation2 + $0x50] sm:$0xff]
          %v722 = vld [vmem:[#allocation2 + $0x58] sm:$0xff]
          %v723 = vld [vmem:[#allocation2 + $0x60] sm:$0xff]
          %v724 = vld [vmem:[#allocation2 + $0x68] sm:$0xff]
          %v725 = vld [vmem:[#allocation2 + $0x70] sm:$0xff]
          %v726 = vld [vmem:[#allocation2 + $0x78] sm:$0xff]
          %v727 = vld [vmem:[%s411] sm:$0x1]
          %v729 = vlaneseq
          %v730 = vshrl.u32 %v729, 7
          %v731 = vsub.s32 0, %v730
          %v732 = vrot.slane %v727, %v731
          %v734 = vadd.f32 %v711, %v732
          %v735 = vadd.f32 %v712, %v732
          %v736 = vadd.f32 %v713, %v732
          %v737 = vadd.f32 %v714, %v732
          %v738 = vadd.f32 %v715, %v732
          %v739 = vadd.f32 %v716, %v732
          %v740 = vadd.f32 %v717, %v732
          %v741 = vadd.f32 %v718, %v732
          %v742 = vadd.f32 %v719, %v732
          %v743 = vadd.f32 %v720, %v732
          %v744 = vadd.f32 %v721, %v732
          %v745 = vadd.f32 %v722, %v732
          %v746 = vadd.f32 %v723, %v732
          %v747 = vadd.f32 %v724, %v732
          %v748 = vadd.f32 %v725, %v732
          %v749 = vadd.f32 %v726, %v732
          %v750 = vmax.f32 %v734, 0.0
          %v751 = vmax.f32 %v735, 0.0
          %v752 = vmax.f32 %v736, 0.0
          %v753 = vmax.f32 %v737, 0.0
          %v754 = vmax.f32 %v738, 0.0
          %v755 = vmax.f32 %v739, 0.0
          %v756 = vmax.f32 %v740, 0.0
          %v757 = vmax.f32 %v741, 0.0
          %v758 = vmax.f32 %v742, 0.0
          %v759 = vmax.f32 %v743, 0.0
          %v760 = vmax.f32 %v744, 0.0
          %v761 = vmax.f32 %v745, 0.0
          %v762 = vmax.f32 %v746, 0.0
          %v763 = vmax.f32 %v747, 0.0
          %v764 = vmax.f32 %v748, 0.0
          %v765 = vmax.f32 %v749, 0.0
          %v766 = vpack.c.bf16 %v751, %v750
          %v767 = vpack.c.bf16 %v753, %v752
          %v768 = vpack.c.bf16 %v755, %v754
          %v769 = vpack.c.bf16 %v757, %v756
          %v770 = vpack.c.bf16 %v759, %v758
          %v771 = vpack.c.bf16 %v761, %v760
          %v772 = vpack.c.bf16 %v763, %v762
          %v773 = vpack.c.bf16 %v765, %v764
          %v774 = vld [vmem:[%s353] sm:$0xf]
          %v775 = vld [vmem:[%s353 + $0x4] sm:$0xf]
          %v776 = vld [vmem:[%s353 + $0x8] sm:$0xf]
          %v777 = vld [vmem:[%s353 + $0xc] sm:$0xf]
          %v778 = vld [vmem:[%s353 + $0x10] sm:$0xf]
          %v779 = vld [vmem:[%s353 + $0x14] sm:$0xf]
          %v780 = vld [vmem:[%s353 + $0x18] sm:$0xf]
          %v781 = vld [vmem:[%s353 + $0x1c] sm:$0xf]
          %v782 = vld [vmem:[%s353 + $0x20] sm:$0xf]
          %v783 = vld [vmem:[%s353 + $0x24] sm:$0xf]
          %v784 = vld [vmem:[%s353 + $0x28] sm:$0xf]
          %v785 = vld [vmem:[%s353 + $0x2c] sm:$0xf]
          %v786 = vld [vmem:[%s353 + $0x30] sm:$0xf]
          %v787 = vld [vmem:[%s353 + $0x34] sm:$0xf]
          %v788 = vld [vmem:[%s353 + $0x38] sm:$0xf]
          %v789 = vld [vmem:[%s353 + $0x3c] sm:$0xf]
          %v790 = vld [vmem:[%s362] sm:$0xf]
          %v791 = vld [vmem:[%s362 + $0x4] sm:$0xf]
          %v792 = vld [vmem:[%s362 + $0x8] sm:$0xf]
          %v793 = vld [vmem:[%s362 + $0xc] sm:$0xf]
          %v794 = vld [vmem:[%s362 + $0x10] sm:$0xf]
          %v795 = vld [vmem:[%s362 + $0x14] sm:$0xf]
          %v796 = vld [vmem:[%s362 + $0x18] sm:$0xf]
          %v797 = vld [vmem:[%s362 + $0x1c] sm:$0xf]
          %v798 = vld [vmem:[%s362 + $0x20] sm:$0xf]
          %v799 = vld [vmem:[%s362 + $0x24] sm:$0xf]
          %v800 = vld [vmem:[%s362 + $0x28] sm:$0xf]
          %v801 = vld [vmem:[%s362 + $0x2c] sm:$0xf]
          %v802 = vld [vmem:[%s362 + $0x30] sm:$0xf]
          %v803 = vld [vmem:[%s362 + $0x34] sm:$0xf]
          %v804 = vld [vmem:[%s362 + $0x38] sm:$0xf]
          %v805 = vld [vmem:[%s362 + $0x3c] sm:$0xf]
          %v806 = vunpack.c.l.bf16 %v790
          %v807 = vunpack.c.l.bf16 %v791
          %v808 = vunpack.c.l.bf16 %v792
          %v809 = vunpack.c.l.bf16 %v793
          %v810 = vunpack.c.l.bf16 %v794
          %v811 = vunpack.c.l.bf16 %v795
          %v812 = vunpack.c.l.bf16 %v796
          %v813 = vunpack.c.l.bf16 %v797
          %v814 = vunpack.c.l.bf16 %v798
          %v815 = vunpack.c.l.bf16 %v799
          %v816 = vunpack.c.l.bf16 %v800
          %v817 = vunpack.c.l.bf16 %v801
          %v818 = vunpack.c.l.bf16 %v802
          %v819 = vunpack.c.l.bf16 %v803
          %v820 = vunpack.c.l.bf16 %v804
          %v821 = vunpack.c.l.bf16 %v805
          %v838 = vunpack.c.l.b16 %v774
          %v839 = vunpack.c.l.b16 %v775
          %v840 = vunpack.c.l.b16 %v776
          %v841 = vunpack.c.l.b16 %v777
          %v842 = vunpack.c.l.b16 %v778
          %v843 = vunpack.c.l.b16 %v779
          %v844 = vunpack.c.l.b16 %v780
          %v845 = vunpack.c.l.b16 %v781
          %v846 = vunpack.c.l.b16 %v782
          %v847 = vunpack.c.l.b16 %v783
          %v848 = vunpack.c.l.b16 %v784
          %v849 = vunpack.c.l.b16 %v785
          %v850 = vunpack.c.l.b16 %v786
          %v851 = vunpack.c.l.b16 %v787
          %v852 = vunpack.c.l.b16 %v788
          %v853 = vunpack.c.l.b16 %v789
          %v854 = vpack.c.b16 %v839, %v838
          %v855 = vpack.c.b16 %v841, %v840
          %v856 = vpack.c.b16 %v843, %v842
          %v857 = vpack.c.b16 %v845, %v844
          %v858 = vpack.c.b16 %v847, %v846
          %v859 = vpack.c.b16 %v849, %v848
          %v860 = vpack.c.b16 %v851, %v850
          %v861 = vpack.c.b16 %v853, %v852
          %870 = vmatprep.subr.bf16.mxu0 0
          %871 = vmatpush1.bf16.msra.mxu0 %v854
          %872 = vmatprep.subr.bf16.mxu0 0
          %873 = vmatpush1.bf16.msra.mxu0 %v855
          %874 = vmatprep.subr.bf16.mxu0 0
          %875 = vmatpush1.bf16.msra.mxu0 %v856
          %876 = vmatprep.subr.bf16.mxu0 0
          %877 = vmatpush1.bf16.msra.mxu0 %v857
          %878 = vmatprep.subr.bf16.mxu0 0
          %879 = vmatpush1.bf16.msra.mxu0 %v858
          %880 = vmatprep.subr.bf16.mxu0 0
          %881 = vmatpush1.bf16.msra.mxu0 %v859
          %882 = vmatprep.subr.bf16.mxu0 0
          %883 = vmatpush1.bf16.msra.mxu0 %v860
          %884 = vmatprep.subr.bf16.mxu0 0
          %885 = vmatpush1.bf16.msra.mxu0 %v861
          %886 = vmatprep.subr.bf16.mxu0 0
          %887 = vmatpush1.bf16.msra.mxu0 0
          %888 = vmatprep.subr.bf16.mxu0 0
          %889 = vmatpush1.bf16.msra.mxu0 0
          %890 = vmatprep.subr.bf16.mxu0 0
          %891 = vmatpush1.bf16.msra.mxu0 0
          %892 = vmatprep.subr.bf16.mxu0 0
          %893 = vmatpush1.bf16.msra.mxu0 0
          %894 = vmatprep.subr.bf16.mxu0 0
          %895 = vmatpush1.bf16.msra.mxu0 0
          %896 = vmatprep.subr.bf16.mxu0 0
          %897 = vmatpush1.bf16.msra.mxu0 0
          %898 = vmatprep.subr.bf16.mxu0 0
          %899 = vmatpush1.bf16.msra.mxu0 0
          %900 = vmatprep.subr.bf16.mxu0 0
          %901 = vmatpush1.bf16.msra.mxu0 0
          %902 = vmatprep.mubr.bf16.mxu0 0
          %903 = vmatmul.mubr.bf16.gmra.mrb[0].mxu0 %v766
          %v904 = vpop.f32.mrb[0].mxu0
          %v905 = vadd.f32 %v806, %v904
          %v906 = vpop.f32.mrb[0].mxu0
          %v907 = vpop.f32.mrb[0].mxu0
          %v908 = vadd.f32 %v807, %v907
          %v909 = vpop.f32.mrb[0].mxu0
          %910 = vmatprep.mubr.bf16.mxu0 0
          %911 = vmatmul.mubr.bf16.gmra.mrb[0].mxu0 %v767
          %v912 = vpop.f32.mrb[0].mxu0
          %v913 = vadd.f32 %v808, %v912
          %v914 = vpop.f32.mrb[0].mxu0
          %v915 = vpop.f32.mrb[0].mxu0
          %v916 = vadd.f32 %v809, %v915
          %v917 = vpop.f32.mrb[0].mxu0
          %918 = vmatprep.mubr.bf16.mxu0 0
          %919 = vmatmul.mubr.bf16.gmra.mrb[0].mxu0 %v768
          %v920 = vpop.f32.mrb[0].mxu0
          %v921 = vadd.f32 %v810, %v920
          %v922 = vpop.f32.mrb[0].mxu0
          %v923 = vpop.f32.mrb[0].mxu0
          %v924 = vadd.f32 %v811, %v923
          %v925 = vpop.f32.mrb[0].mxu0
          %926 = vmatprep.mubr.bf16.mxu0 0
          %927 = vmatmul.mubr.bf16.gmra.mrb[0].mxu0 %v769
          %v928 = vpop.f32.mrb[0].mxu0
          %v929 = vadd.f32 %v812, %v928
          %v930 = vpop.f32.mrb[0].mxu0
          %v931 = vpop.f32.mrb[0].mxu0
          %v932 = vadd.f32 %v813, %v931
          %v933 = vpop.f32.mrb[0].mxu0
          %934 = vmatprep.mubr.bf16.mxu0 0
          %935 = vmatmul.mubr.bf16.gmra.mrb[0].mxu0 %v770
          %v936 = vpop.f32.mrb[0].mxu0
          %v937 = vadd.f32 %v814, %v936
          %v938 = vpop.f32.mrb[0].mxu0
          %v939 = vpop.f32.mrb[0].mxu0
          %v940 = vadd.f32 %v815, %v939
          %v941 = vpop.f32.mrb[0].mxu0
          %942 = vmatprep.mubr.bf16.mxu0 0
          %943 = vmatmul.mubr.bf16.gmra.mrb[0].mxu0 %v771
          %v944 = vpop.f32.mrb[0].mxu0
          %v945 = vadd.f32 %v816, %v944
          %v946 = vpop.f32.mrb[0].mxu0
          %v947 = vpop.f32.mrb[0].mxu0
          %v948 = vadd.f32 %v817, %v947
          %v949 = vpop.f32.mrb[0].mxu0
          %950 = vmatprep.mubr.bf16.mxu0 0
          %951 = vmatmul.mubr.bf16.gmra.mrb[0].mxu0 %v772
          %v952 = vpop.f32.mrb[0].mxu0
          %v953 = vadd.f32 %v818, %v952
          %v954 = vpop.f32.mrb[0].mxu0
          %v955 = vpop.f32.mrb[0].mxu0
          %v956 = vadd.f32 %v819, %v955
          %v957 = vpop.f32.mrb[0].mxu0
          %958 = vmatprep.mubr.bf16.mxu0 0
          %959 = vmatmul.mubr.bf16.gmra.mrb[0].mxu0 %v773
          %v960 = vpop.f32.mrb[0].mxu0
          %v961 = vadd.f32 %v820, %v960
          %v962 = vpop.f32.mrb[0].mxu0
          %v963 = vpop.f32.mrb[0].mxu0
          %v964 = vadd.f32 %v821, %v963
          %v965 = vpop.f32.mrb[0].mxu0
          %966 = vdwg.mxu0
          %v967 = vpack.c.bf16 %v908, %v905
          %v968 = vpack.c.bf16 %v916, %v913
          %v969 = vpack.c.bf16 %v924, %v921
          %v970 = vpack.c.bf16 %v932, %v929
          %v971 = vpack.c.bf16 %v940, %v937
          %v972 = vpack.c.bf16 %v948, %v945
          %v973 = vpack.c.bf16 %v956, %v953
          %v974 = vpack.c.bf16 %v964, %v961
          %v983 = vunpack.c.l.b16 %v967
          %v984 = vunpack.c.h.b16 %v967
          %v985 = vunpack.c.l.b16 %v968
          %v986 = vunpack.c.h.b16 %v968
          %v987 = vunpack.c.l.b16 %v969
          %v988 = vunpack.c.h.b16 %v969
          %v989 = vunpack.c.l.b16 %v970
          %v990 = vunpack.c.h.b16 %v970
          %v991 = vunpack.c.l.b16 %v971
          %v992 = vunpack.c.h.b16 %v971
          %v993 = vunpack.c.l.b16 %v972
          %v994 = vunpack.c.h.b16 %v972
          %v995 = vunpack.c.l.b16 %v973
          %v996 = vunpack.c.h.b16 %v973
          %v997 = vunpack.c.l.b16 %v974
          %v998 = vunpack.c.h.b16 %v974
          %v999 = vpack.c.b16 %v983, %v983
          %v1000 = vpack.c.b16 %v984, %v984
          %v1001 = vpack.c.b16 %v985, %v985
          %v1002 = vpack.c.b16 %v986, %v986
          %v1003 = vpack.c.b16 %v987, %v987
          %v1004 = vpack.c.b16 %v988, %v988
          %v1005 = vpack.c.b16 %v989, %v989
          %v1006 = vpack.c.b16 %v990, %v990
          %v1007 = vpack.c.b16 %v991, %v991
          %v1008 = vpack.c.b16 %v992, %v992
          %v1009 = vpack.c.b16 %v993, %v993
          %v1010 = vpack.c.b16 %v994, %v994
          %v1011 = vpack.c.b16 %v995, %v995
          %v1012 = vpack.c.b16 %v996, %v996
          %v1013 = vpack.c.b16 %v997, %v997
          %v1014 = vpack.c.b16 %v998, %v998
          %1031 = vst [vmem:[%s406] sm:$0xf] %v999
          %1032 = vst [vmem:[%s406 + $0x4] sm:$0xf] %v1000
          %1033 = vst [vmem:[%s406 + $0x8] sm:$0xf] %v1001
          %1034 = vst [vmem:[%s406 + $0xc] sm:$0xf] %v1002
          %1035 = vst [vmem:[%s406 + $0x10] sm:$0xf] %v1003
          %1036 = vst [vmem:[%s406 + $0x14] sm:$0xf] %v1004
          %1037 = vst [vmem:[%s406 + $0x18] sm:$0xf] %v1005
          %1038 = vst [vmem:[%s406 + $0x1c] sm:$0xf] %v1006
          %1039 = vst [vmem:[%s406 + $0x20] sm:$0xf] %v1007
          %1040 = vst [vmem:[%s406 + $0x24] sm:$0xf] %v1008
          %1041 = vst [vmem:[%s406 + $0x28] sm:$0xf] %v1009
          %1042 = vst [vmem:[%s406 + $0x2c] sm:$0xf] %v1010
          %1043 = vst [vmem:[%s406 + $0x30] sm:$0xf] %v1011
          %1044 = vst [vmem:[%s406 + $0x34] sm:$0xf] %v1012
          %1045 = vst [vmem:[%s406 + $0x38] sm:$0xf] %v1013
          %1046 = vst [vmem:[%s406 + $0x3c] sm:$0xf] %v1014
        $region64: #{tpu_custom_call.1} parent=39 // pred_fallthru
          _
        %s1047 = sand.u32 %s195, 1
        %s1048 = scalar_lea.sflag [#allocation5], %s1047
        %s1049 = sand.u32 %s195, 1
        %s1050 = smul.addr %s1049, 64
        %s1051 = scalar_lea.vmem [#allocation11], %s1050
        // Predicated region
        $region65: #{tpu_custom_call.1} parent=39 // pred_check
          %p1052 = pneg %p205
        $region66: #{tpu_custom_call.1} parent=39 // pred_check_branch
          %1054 = sbr.rel (%p1052) target = $region68
        $region67: #{tpu_custom_call.1} parent=39 // pred_region
          %s1055 = smul.u32 16, %s34
          %s1057 = ssub.s32 1024, 1024
          %1058 = vsyncadd %s1048, %s1057
          %s1059 = smul.addr %s33, 16
          %s1060 = sadd.s32 %s1055, %s1059
          %s1061 = smul.addr %s1060, 64
          %s1062 = scalar_lea.hbm %s5, %s1061
          %s1063 = sshll.u32 %s1051, 4
          %s1064 = int_to_ptr.vmem [resolvable:$true] %s1063
          %1069 = dma.vmem_to_hbm [thread:$0]  %s1064, 1024, %s1062, %s1048, 64, 64, 4
        $region68: #{tpu_custom_call.1} parent=39 // pred_fallthru
          _
      $region40: #{tpu_custom_call.1} parent=5 // pred_fallthru
        _
      %p1070 = scmp.le.s32.totalorder 2, %s23
      // Predicated region
      $region69: #{tpu_custom_call.1} parent=5 // pred_check
        %p1071 = pneg %p1070
      $region70: #{tpu_custom_call.1} parent=5 // pred_check_branch
        %1073 = sbr.rel (%p1071) target = $region72
      $region71: #{tpu_custom_call.1} parent=5 // pred_region
        %s1074 = ssub.s32 %s23, 2
        // Predicated region
        $region73: #{tpu_custom_call.1} parent=71 // pred_check
          %p1075 = pneg %p211
        $region74: #{tpu_custom_call.1} parent=71 // pred_check_branch
          %1077 = sbr.rel (%p1075) target = $region76
        $region75: #{tpu_custom_call.1} parent=71 // pred_region
          %s1078 = sand.u32 %s196, 1
          %s1079 = scalar_lea.sflag [#allocation5], %s1078
          %s1080 = sand.u32 %s196, 1
          %s1081 = smul.addr %s1080, 64
          %s1082 = scalar_lea.vmem [#allocation11], %s1081
          %1083 = dma.done %s1079, 1024
        $region76: #{tpu_custom_call.1} parent=71 // pred_fallthru
          _
      $region72: #{tpu_custom_call.1} parent=5 // pred_fallthru
        _
    $region6: #{tpu_custom_call.1} parent=1 // loop_footer
      %s27 = sadd.s32 1, %s23
    $region7: #{tpu_custom_call.1} parent=1 // loop_footer_branch
      %22 = sbr.rel target = $region3
    $region8: #{tpu_custom_call.1} parent=1 // loop_exit
      _
    %1084 = vsyncpa [#allocation4], 1
    %s1085 = scalar_lea.sflag [#allocation4], 1
    %1086 = vsyncpa %s1085, 1
    %1087 = vsyncpa [#allocation7], 1
    %s1088 = scalar_lea.sflag [#allocation7], 1
    %1089 = vsyncpa %s1088, 1
    %1090 = vsyncpa [#allocation10], 1
    %s1091 = scalar_lea.sflag [#allocation10], 1
    %1092 = vsyncpa %s1091, 1
    %1093 = vsyncpa [#allocation5], 1
    %s1094 = scalar_lea.sflag [#allocation5], 1
    %1095 = vsyncpa %s1094, 1

</llo_original>
